<compile_context>
chip_gen: v7x
topology: tpu7x:2x2x1
jax: 0.10.0
libtpu: 0.0.40
codegen_flags: <defaults>
</compile_context>

<pallas_src>
import jax
import jax.numpy as jnp
from jax.experimental import pallas as pl
from jax.experimental.pallas import tpu as pltpu


def _sepconv_kernel(ph_ref, wt_ref, b_ref, out_ref, patch_ref):
    """Fused depthwise + pointwise 1-D conv for one batch element.

    ph_ref   : (stride, Cin, Lph)  phased zero-padded activation, channels on sublanes.
    wt_ref   : (Cout, K*Cin)       folded weight  Wt[co, k*Cin+c] = dw[c,k] * pw[co,c].
    b_ref    : (Cout, 1)           folded bias    b = pw @ dbias + pbias.
    out_ref  : (Cout, Lout)        lane-dense output block.
    patch_ref: (K*Cin, Lout)       VMEM scratch holding the im2col patches.
    """
    stride, Cin, _ = ph_ref.shape
    Lout = out_ref.shape[-1]
    K = wt_ref.shape[-1] // Cin
    # In-kernel im2col: tap k lives in stride-phase k % stride at within-phase
    # offset k // stride, so every read below is a static unit-stride lane
    # window and every write is a static sublane slab of the scratch
    # (8-row-aligned whenever Cin % 8 == 0, as in LCNet).
    for k in range(K):
        p, o = k % stride, k // stride
        patch_ref[k * Cin:(k + 1) * Cin, :] = ph_ref[p, :, o:o + Lout]
    # Single lane-dense MXU matmul + bias, f32 accumulation.
    out_ref[...] = (
        jnp.dot(wt_ref[...], patch_ref[...], preferred_element_type=jnp.float32)
        + b_ref[...]
    ).astype(out_ref.dtype)


def separable_conv1d(x, dw, dbias, pw, pbias, *, stride=1, padding=0):
    """PyTorch SeparableConv1D.forward.

    x     : (B, Cin, L)  NCL, like nn.Conv1d input.
    dw    : (Cin, K)     depthwise weight  (torch (Cin, 1, K) squeezed).
    dbias : (Cin,)       depthwise bias.
    pw    : (Cout, Cin)  pointwise weight  (torch (Cout, Cin, 1) squeezed).
    pbias : (Cout,)      pointwise bias.
    returns (B, Cout, Lout) with Lout = (L + 2*padding - K)//stride + 1.
    """
    B, Cin, L = x.shape
    Cout = pw.shape[0]
    K = dw.shape[1]
    Lpad = L + 2 * padding
    assert Lpad >= K, "non-positive output length (L + 2*padding < kernel_size)"
    Lout = (Lpad - K) // stride + 1

    # Fold depthwise into pointwise (host side, tiny, one-time).
    wt = (pw[:, None, :] * dw.T[None, :, :]).reshape(Cout, K * Cin)   # (Cout, K*Cin)
    bfold = (pw @ dbias + pbias).reshape(Cout, 1)                     # (Cout, 1)

    # Zero-pad along L (channels stay on sublanes — no NCL->NLC transpose) and
    # de-interleave by stride phase so every in-kernel tap is a unit-stride
    # lane window.  Trailing pad = padding + round-up-to-stride, always >= 0.
    extra = pl.cdiv(Lpad, stride) * stride - Lpad
    xpad = jnp.pad(x, ((0, 0), (0, 0), (padding, padding + extra)))
    Lph = (Lpad + extra) // stride
    phases = jnp.transpose(xpad.reshape(B, Cin, Lph, stride), (3, 0, 1, 2))

    # TODO(synk): for large L, additionally tile Lout into 128-multiples (input
    # window carries a ceil((K-1)/stride) halo), cast activations/weights to
    # bf16 with f32 accumulation, and re-derive tile sizes for v7x's 64 MiB
    # VMEM / raise vmem_limit_bytes on v5e/v6e; at LCNet sizes the op is
    # launch/layout-overhead bound regardless.
    grid_spec = pltpu.PrefetchScalarGridSpec(
        num_scalar_prefetch=0,
        grid=(B,),
        in_specs=[
            pl.BlockSpec((stride, None, Cin, Lph), lambda b: (0, b, 0, 0)),
            pl.BlockSpec((Cout, K * Cin), lambda b: (0, 0)),
            pl.BlockSpec((Cout, 1), lambda b: (0, 0)),
        ],
        out_specs=pl.BlockSpec((None, Cout, Lout), lambda b: (b, 0, 0)),
        scratch_shapes=[pltpu.VMEM((K * Cin, Lout), jnp.float32)],
    )
    return pl.pallas_call(
        _sepconv_kernel,
        out_shape=jax.ShapeDtypeStruct((B, Cout, Lout), jnp.float32),
        grid_spec=grid_spec,
        compiler_params=pltpu.CompilerParams(
            dimension_semantics=("parallel",)),
    )(phases, wt, bfold)


def _reference(x, dw, dbias, pw, pbias, stride, padding):
    """Pure-jnp reference (depthwise then pointwise, PyTorch semantics)."""
    B, Cin, L = x.shape
    K = dw.shape[1]
    Lout = (L + 2 * padding - K) // stride + 1
    xp = jnp.pad(x, ((0, 0), (0, 0), (padding, padding)))
    cols = jnp.stack(
        [xp[:, :, k:k + stride * (Lout - 1) + 1:stride] for k in range(K)], axis=-1
    )                                                        # (B, Cin, Lout, K)
    y = jnp.einsum("bclk,ck->bcl", cols, dw) + dbias[None, :, None]
    return jnp.einsum("bcl,oc->bol", y, pw) + pbias[None, :, None]


if __name__ == "__main__":
    # SeparableConv1D(2n, 2n, kernel_size=5, stride=2, padding=2) with n=4,
    # exactly as instantiated inside LCNet's DWConvMobile.
    B, Cin, Cout, L = 2, 8, 8, 32
    K, stride, padding = 5, 2, 2

    key = jax.random.PRNGKey(0)
    kx, k1, k2, k3, k4 = jax.random.split(key, 5)
    x = jax.random.normal(kx, (B, Cin, L), jnp.float32)
    dw = 0.1 * jax.random.normal(k1, (Cin, K), jnp.float32)
    dbias = 0.05 * jax.random.normal(k2, (Cin,), jnp.float32)
    pw = 0.2 * jax.random.normal(k3, (Cout, Cin), jnp.float32)
    pbias = 0.05 * jax.random.normal(k4, (Cout,), jnp.float32)

    fwd = jax.jit(separable_conv1d, static_argnames=("stride", "padding"))
    out = jax.block_until_ready(
        fwd(x, dw, dbias, pw, pbias, stride=stride, padding=padding))

    Lout = (L + 2 * padding - K) // stride + 1
    assert out.shape == (B, Cout, Lout), out.shape
    ref = _reference(x, dw, dbias, pw, pbias, stride, padding)
    err = float(jnp.max(jnp.abs(out - ref)))
    assert err < 1e-4, f"max abs err {err}"
    print("KERNEL_OK")
</pallas_src>

<mosaic_0001>
module attributes {stable_mosaic.version = 11 : i64} {
  func.func @_sepconv_kernel(%arg0: i32, %arg1: memref<2x1x8x18xf32, #tpu.memory_space<vmem>>, %arg2: memref<8x40xf32, #tpu.memory_space<vmem>>, %arg3: memref<8x1xf32, #tpu.memory_space<vmem>>, %arg4: memref<1x8x16xf32, #tpu.memory_space<vmem>>, %arg5: memref<40x16xf32, #tpu.memory_space<vmem>>) attributes {dimension_semantics = [#tpu.dimension_semantics<parallel>], iteration_bounds = array<i64: 2>, scalar_prefetch = 0 : i64, scratch_operands = 1 : i64, tpu.core_type = #tpu.core_type<tc>, window_params = [{transform_indices = @transform_0, window_bounds = array<i64: 2, 1, 8, 18>}, {pipeline_mode = #tpu.pipeline_mode<synchronous>, transform_indices = @transform_1, window_bounds = array<i64: 8, 40>}, {pipeline_mode = #tpu.pipeline_mode<synchronous>, transform_indices = @transform_2, window_bounds = array<i64: 8, 1>}, {transform_indices = @transform_3, window_bounds = array<i64: 1, 8, 16>}]} {
    %c0 = arith.constant 0 : index
    %c0_0 = arith.constant 0 : index
    %c0_1 = arith.constant 0 : index
    %c0_2 = arith.constant 0 : index
    %0 = vector.load %arg1[%c0, %c0_0, %c0_1, %c0_2] : memref<2x1x8x18xf32, #tpu.memory_space<vmem>>, vector<1x1x8x16xf32>
    %1 = vector.shape_cast %0 : vector<1x1x8x16xf32> to vector<8x16xf32>
    %c0_3 = arith.constant 0 : index
    %c0_4 = arith.constant 0 : index
    %2 = vector.load %arg5[%c0_3, %c0_4] : memref<40x16xf32, #tpu.memory_space<vmem>>, vector<8x16xf32>
    tpu.vector_store %arg5[%c0_3, %c0_4], %1 {strides = array<i32>} : memref<40x16xf32, #tpu.memory_space<vmem>>, vector<8x16xf32>,
    %c1 = arith.constant 1 : index
    %c0_5 = arith.constant 0 : index
    %c0_6 = arith.constant 0 : index
    %c0_7 = arith.constant 0 : index
    %3 = vector.load %arg1[%c1, %c0_5, %c0_6, %c0_7] : memref<2x1x8x18xf32, #tpu.memory_space<vmem>>, vector<1x1x8x16xf32>
    %4 = vector.shape_cast %3 : vector<1x1x8x16xf32> to vector<8x16xf32>
    %c8 = arith.constant 8 : index
    %c0_8 = arith.constant 0 : index
    %5 = vector.load %arg5[%c8, %c0_8] : memref<40x16xf32, #tpu.memory_space<vmem>>, vector<8x16xf32>
    tpu.vector_store %arg5[%c8, %c0_8], %4 {strides = array<i32>} : memref<40x16xf32, #tpu.memory_space<vmem>>, vector<8x16xf32>,
    %c0_9 = arith.constant 0 : index
    %c0_10 = arith.constant 0 : index
    %c0_11 = arith.constant 0 : index
    %c1_12 = arith.constant 1 : index
    %6 = vector.load %arg1[%c0_9, %c0_10, %c0_11, %c1_12] : memref<2x1x8x18xf32, #tpu.memory_space<vmem>>, vector<1x1x8x16xf32>
    %7 = vector.shape_cast %6 : vector<1x1x8x16xf32> to vector<8x16xf32>
    %c16 = arith.constant 16 : index
    %c0_13 = arith.constant 0 : index
    %8 = vector.load %arg5[%c16, %c0_13] : memref<40x16xf32, #tpu.memory_space<vmem>>, vector<8x16xf32>
    tpu.vector_store %arg5[%c16, %c0_13], %7 {strides = array<i32>} : memref<40x16xf32, #tpu.memory_space<vmem>>, vector<8x16xf32>,
    %c1_14 = arith.constant 1 : index
    %c0_15 = arith.constant 0 : index
    %c0_16 = arith.constant 0 : index
    %c1_17 = arith.constant 1 : index
    %9 = vector.load %arg1[%c1_14, %c0_15, %c0_16, %c1_17] : memref<2x1x8x18xf32, #tpu.memory_space<vmem>>, vector<1x1x8x16xf32>
    %10 = vector.shape_cast %9 : vector<1x1x8x16xf32> to vector<8x16xf32>
    %c24 = arith.constant 24 : index
    %c0_18 = arith.constant 0 : index
    %11 = vector.load %arg5[%c24, %c0_18] : memref<40x16xf32, #tpu.memory_space<vmem>>, vector<8x16xf32>
    tpu.vector_store %arg5[%c24, %c0_18], %10 {strides = array<i32>} : memref<40x16xf32, #tpu.memory_space<vmem>>, vector<8x16xf32>,
    %c0_19 = arith.constant 0 : index
    %c0_20 = arith.constant 0 : index
    %c0_21 = arith.constant 0 : index
    %c2 = arith.constant 2 : index
    %12 = vector.load %arg1[%c0_19, %c0_20, %c0_21, %c2] : memref<2x1x8x18xf32, #tpu.memory_space<vmem>>, vector<1x1x8x16xf32>
    %13 = vector.shape_cast %12 : vector<1x1x8x16xf32> to vector<8x16xf32>
    %c32 = arith.constant 32 : index
    %c0_22 = arith.constant 0 : index
    %14 = vector.load %arg5[%c32, %c0_22] : memref<40x16xf32, #tpu.memory_space<vmem>>, vector<8x16xf32>
    tpu.vector_store %arg5[%c32, %c0_22], %13 {strides = array<i32>} : memref<40x16xf32, #tpu.memory_space<vmem>>, vector<8x16xf32>,
    %c0_23 = arith.constant 0 : index
    %c0_24 = arith.constant 0 : index
    %15 = vector.load %arg2[%c0_23, %c0_24] : memref<8x40xf32, #tpu.memory_space<vmem>>, vector<8x40xf32>
    %c0_25 = arith.constant 0 : index
    %c0_26 = arith.constant 0 : index
    %16 = vector.load %arg5[%c0_25, %c0_26] : memref<40x16xf32, #tpu.memory_space<vmem>>, vector<40x16xf32>
    %cst = arith.constant dense<0.000000e+00> : vector<8x16xf32>
    %17 = tpu.matmul %15, %16, %cst {dimension_numbers = #tpu.dot_dimension_numbers<[1], [0], [0], [1], [0, 0, 1, 1], [], []>} : vector<8x40xf32>, vector<40x16xf32>, vector<8x16xf32> -> vector<8x16xf32>
    %c0_27 = arith.constant 0 : index
    %c0_28 = arith.constant 0 : index
    %18 = vector.load %arg3[%c0_27, %c0_28] : memref<8x1xf32, #tpu.memory_space<vmem>>, vector<8x1xf32>
    %19 = vector.broadcast %18 : vector<8x1xf32> to vector<8x16xf32>
    %20 = arith.addf %17, %19 : vector<8x16xf32>
    %c0_29 = arith.constant 0 : index
    %c0_30 = arith.constant 0 : index
    %c0_31 = arith.constant 0 : index
    %21 = vector.load %arg4[%c0_29, %c0_30, %c0_31] : memref<1x8x16xf32, #tpu.memory_space<vmem>>, vector<1x8x16xf32>
    %22 = vector.shape_cast %21 : vector<1x8x16xf32> to vector<8x16xf32>
    %23 = vector.shape_cast %20 : vector<8x16xf32> to vector<1x8x16xf32>
    tpu.vector_store %arg4[%c0_29, %c0_30, %c0_31], %23 {strides = array<i32>} : memref<1x8x16xf32, #tpu.memory_space<vmem>>, vector<1x8x16xf32>,
    return
  }
  func.func @transform_0(%arg0: i32) -> (i32, i32, i32, i32) {
    %c0_i32 = arith.constant 0 : i32
    %c0_i32_0 = arith.constant 0 : i32
    %c0_i32_1 = arith.constant 0 : i32
    %c0_i32_2 = arith.constant 0 : i32
    return %c0_i32, %arg0, %c0_i32_0, %c0_i32_1 : i32, i32, i32, i32
  }
  func.func @transform_1(%arg0: i32) -> (i32, i32) {
    %c0_i32 = arith.constant 0 : i32
    %c0_i32_0 = arith.constant 0 : i32
    %c0_i32_1 = arith.constant 0 : i32
    return %c0_i32, %c0_i32_0 : i32, i32
  }
  func.func @transform_2(%arg0: i32) -> (i32, i32) {
    %c0_i32 = arith.constant 0 : i32
    %c0_i32_0 = arith.constant 0 : i32
    %c0_i32_1 = arith.constant 0 : i32
    return %c0_i32, %c0_i32_0 : i32, i32
  }
  func.func @transform_3(%arg0: i32) -> (i32, i32, i32) {
    %c0_i32 = arith.constant 0 : i32
    %c0_i32_0 = arith.constant 0 : i32
    %c0_i32_1 = arith.constant 0 : i32
    return %arg0, %c0_i32, %c0_i32_0 : i32, i32, i32
  }
}

</mosaic_0001>

<llo_original>
// kernel: separable_conv1d.1
$region0: #{separable_conv1d.1}
  #allocation0 [shape = 'u32[]', space=smem, size = 0x4, offset = 0x4, fixed_abs, tag = 'smem constant byte address 0x4 - core index']
  #allocation1 [shape = 'u32[144,128]{1,0:T(1,128)}', space=vmem, size = 0x12000, scoped, tag = 'internal scratch']
  #allocation2 [shape = 'f32[40,16]{1,0:T(8,128)}', space=vmem, size = 0x5000, scoped, tag = 'scratch operand']
  %s0 = inlined_call_operand.vmem [shape: f32[2,2,8,18], index: 0, kind: input, shape index: {}]
  %s1 = inlined_call_operand.vmem [shape: f32[8,40], index: 1, kind: input, shape index: {}]
  %s2 = inlined_call_operand.vmem [shape: f32[8,1], index: 2, kind: input, shape index: {}]
  %s3 = inlined_call_operand.hbm [shape: f32[2,8,16], index: 3, kind: output, shape index: {}]
  %s4 = sld [smem:[#allocation0]]
  $region83: #{separable_conv1d.1} parent=0
    _
  %s6 = ssub.s32 1, %s4
  %s7 = scalar_select 0, %s6, %s4
  $region1: #{separable_conv1d.1} parent=0
    #allocation3 [shape = 'u8[16384]{0}', space=vmem, size = 0x4000, scoped, tag = 'input window, operand 0']
    #allocation4 [shape = 'u8[8192]{0}', space=vmem, size = 0x2000, scoped, tag = 'output window, operand 0']
    #allocation5 [shape = 's32[2]{0}', space=sflag, size = 0x8, scoped, tag = 'scoped memory for separable_conv1d.1']
    %8 = vsyncpa [#allocation5], 0
    %s9 = scalar_lea.sflag [#allocation5], 1
    %10 = vsyncpa %s9, 0
    loop: start=0, step=1, limit=4
    $region2: #{separable_conv1d.1} parent=1 // loop_pre_header
      _
    $region3: #{separable_conv1d.1} parent=1 // loop_header
      %s12 = sphi 0, %s16
      %p13 = scmp.ge.s32.totalorder %s12, 4
      %s22 = sphi 0, %s24
      %s25 = sphi 0, %s22
      %s26 = sphi 0, %s25
      %s42 = sphi 0, %s26
      %s46 = sphi 0, %s46
      %s48 = sphi 0, %s46
      %s49 = sphi 0, %s48
      %s63 = sphi 0, %s49
      %s67 = sphi 0, %s67
      %s69 = sphi 0, %s67
      %s70 = sphi 0, %s69
      %s84 = sphi 0, %s70
      %s90 = sphi 0, %s92
      %s93 = sphi 0, %s90
      %s94 = sphi 0, %s93
      %s110 = sphi 0, %s94
    $region4: #{separable_conv1d.1} parent=1 // loop_header_branch
      %15 = sbr.rel (%p13) target = $region8
    $region5: #{separable_conv1d.1} parent=1 // loop_body
      %s17 = ssub.s32 %s12, 1
      %s18 = ssub.s32 %s12, 2
      %s19 = sadd.s32 %s12, 1
      %s20 = ssub.s32 %s12, %s19
      %p21 = scmp.eq.s32.totalorder %s20, 0
      %s23 = sadd.s32 %s22, 1
      %s24 = scalar_select %p21, %s22, %s23
      %p27 = pneg %p21
      %p28 = scmp.eq.s32.totalorder %s12, 1
      %p29 = por %p27, %p28
      %p30 = scmp.ne.s32.totalorder %s22, %s25
      %p31 = scmp.eq.s32.totalorder %s12, 0
      %p32 = por %p30, %p31
      %p33 = scmp.ne.s32.totalorder %s22, %s25
      %p34 = scmp.eq.s32.totalorder %s17, 1
      %p35 = por %p33, %p34
      %p36 = scmp.ne.s32.totalorder %s25, %s26
      %p37 = scmp.eq.s32.totalorder %s17, 0
      %p38 = por %p36, %p37
      %p39 = scmp.ne.s32.totalorder %s25, %s26
      %p40 = scmp.eq.s32.totalorder %s18, 1
      %p41 = por %p39, %p40
      %p43 = scmp.ne.s32.totalorder %s26, %s42
      %p44 = scmp.eq.s32.totalorder %s18, 0
      %p45 = por %p43, %p44
      %s47 = sadd.s32 %s46, 1
      %p50 = scmp.eq.s32.totalorder %s12, 1
      %p51 = scmp.ne.s32.totalorder %s46, %s48
      %p52 = scmp.eq.s32.totalorder %s12, 0
      %p53 = por %p51, %p52
      %p54 = scmp.ne.s32.totalorder %s46, %s48
      %p55 = scmp.eq.s32.totalorder %s17, 1
      %p56 = por %p54, %p55
      %p57 = scmp.ne.s32.totalorder %s48, %s49
      %p58 = scmp.eq.s32.totalorder %s17, 0
      %p59 = por %p57, %p58
      %p60 = scmp.ne.s32.totalorder %s48, %s49
      %p61 = scmp.eq.s32.totalorder %s18, 1
      %p62 = por %p60, %p61
      %p64 = scmp.ne.s32.totalorder %s49, %s63
      %p65 = scmp.eq.s32.totalorder %s18, 0
      %p66 = por %p64, %p65
      %s68 = sadd.s32 %s67, 1
      %p71 = scmp.eq.s32.totalorder %s12, 1
      %p72 = scmp.ne.s32.totalorder %s67, %s69
      %p73 = scmp.eq.s32.totalorder %s12, 0
      %p74 = por %p72, %p73
      %p75 = scmp.ne.s32.totalorder %s67, %s69
      %p76 = scmp.eq.s32.totalorder %s17, 1
      %p77 = por %p75, %p76
      %p78 = scmp.ne.s32.totalorder %s69, %s70
      %p79 = scmp.eq.s32.totalorder %s17, 0
      %p80 = por %p78, %p79
      %p81 = scmp.ne.s32.totalorder %s69, %s70
      %p82 = scmp.eq.s32.totalorder %s18, 1
      %p83 = por %p81, %p82
      %p85 = scmp.ne.s32.totalorder %s70, %s84
      %p86 = scmp.eq.s32.totalorder %s18, 0
      %p87 = por %p85, %p86
      %s88 = ssub.s32 %s12, %s19
      %p89 = scmp.eq.s32.totalorder %s88, 0
      %s91 = sadd.s32 %s90, 1
      %s92 = scalar_select %p89, %s90, %s91
      %p95 = pneg %p89
      %p96 = scmp.eq.s32.totalorder %s12, 1
      %p97 = por %p95, %p96
      %p98 = scmp.ne.s32.totalorder %s90, %s93
      %p99 = scmp.eq.s32.totalorder %s12, 0
      %p100 = por %p98, %p99
      %p101 = scmp.ne.s32.totalorder %s90, %s93
      %p102 = scmp.eq.s32.totalorder %s17, 1
      %p103 = por %p101, %p102
      %p104 = scmp.ne.s32.totalorder %s93, %s94
      %p105 = scmp.eq.s32.totalorder %s17, 0
      %p106 = por %p104, %p105
      %p107 = scmp.ne.s32.totalorder %s93, %s94
      %p108 = scmp.eq.s32.totalorder %s18, 1
      %p109 = por %p107, %p108
      %p111 = scmp.ne.s32.totalorder %s94, %s110
      %p112 = scmp.eq.s32.totalorder %s18, 0
      %p113 = por %p111, %p112
      %p114 = scmp.le.s32.totalorder 1, %s12
      %p115 = scmp.lt.s32.totalorder %s12, 3
      %p116 = pnand %p114, %p115
      %p117 = pneg %p116
      // Predicated region
      $region9: #{separable_conv1d.1} parent=5 // pred_check
        _
      $region10: #{separable_conv1d.1} parent=5 // pred_check_branch
        %119 = sbr.rel (%p116) target = $region12
      $region11: #{separable_conv1d.1} parent=5 // pred_region
        %s120 = ssub.s32 %s12, 1
        // Predicated region
        $region13: #{separable_conv1d.1} parent=11 // pred_check
          %p121 = pneg %p59
        $region14: #{separable_conv1d.1} parent=11 // pred_check_branch
          %123 = sbr.rel (%p121) target = $region16
        $region15: #{separable_conv1d.1} parent=11 // pred_region
          _
        $region16: #{separable_conv1d.1} parent=11 // pred_fallthru
          _
        // Predicated region
        $region17: #{separable_conv1d.1} parent=11 // pred_check
          %p124 = pneg %p80
        $region18: #{separable_conv1d.1} parent=11 // pred_check_branch
          %126 = sbr.rel (%p124) target = $region20
        $region19: #{separable_conv1d.1} parent=11 // pred_region
          _
        $region20: #{separable_conv1d.1} parent=11 // pred_fallthru
          _
      $region12: #{separable_conv1d.1} parent=5 // pred_fallthru
        _
      %p127 = scmp.lt.s32.totalorder %s12, 2
      // Predicated region
      $region21: #{separable_conv1d.1} parent=5 // pred_check
        %p128 = pneg %p127
      $region22: #{separable_conv1d.1} parent=5 // pred_check_branch
        %130 = sbr.rel (%p128) target = $region24
      $region23: #{separable_conv1d.1} parent=5 // pred_region
        // Predicated region
        $region25: #{separable_conv1d.1} parent=23 // pred_check
          %p131 = pneg %p32
        $region26: #{separable_conv1d.1} parent=23 // pred_check_branch
          %133 = sbr.rel (%p131) target = $region28
        $region27: #{separable_conv1d.1} parent=23 // pred_region
          %s134 = sand.u32 %s22, 1
          %s135 = sand.u32 %s22, 1
          %s136 = smul.addr %s135, 16
          %s137 = scalar_lea.vmem [#allocation3], %s136
          %s138 = smul.addr %s12, 8
          %s139 = scalar_lea.vmem %s0, %s138
          // Predicated region
          $region29: #{separable_conv1d.1} parent=27 // pred_check
            _
          $region30: #{separable_conv1d.1} parent=27 // pred_check_branch
            %141 = sbr.rel (0) target = $region32
          $region31: #{separable_conv1d.1} parent=27 // pred_region
            // Predicated region
            $region33: #{separable_conv1d.1} parent=31 // pred_check
              _
            $region34: #{separable_conv1d.1} parent=31 // pred_check_branch
              %143 = sbr.rel (0) target = $region36
            $region35: #{separable_conv1d.1} parent=31 // pred_region
              // Predicated region
              $region48: #{separable_conv1d.1} parent=35 // pred_check
                _
              $region49: #{separable_conv1d.1} parent=35 // pred_check_branch
                %160 = sbr.rel (0) target = $region51
              $region50: #{separable_conv1d.1} parent=35 // pred_region
                loop: start=0, step=1, limit=1
                $region52: #{separable_conv1d.1} parent=50 // loop_pre_header
                  _
                $region53: #{separable_conv1d.1} parent=50 // loop_header
                  %s162 = sphi 0, %s166
                  %p163 = scmp.ge.s32.totalorder %s162, 1
                  %s167 = sphi %s139, %s139
                  %s168 = sphi %s137, %s137
                $region54: #{separable_conv1d.1} parent=50 // loop_header_branch
                  %165 = sbr.rel (%p163) target = $region58
                $region55: #{separable_conv1d.1} parent=50 // loop_body
                  %v169 = vld [vmem:[%s167] sm:$0xff]
                  %170 = vst [vmem:[%s168] sm:$0xff] %v169
                  %v171 = vld [vmem:[%s167 + $0x10] sm:$0xff]
                  %172 = vst [vmem:[%s168 + $0x8] sm:$0xff] %v171
                $region56: #{separable_conv1d.1} parent=50 // loop_footer
                  %s166 = sadd.s32 1, %s162
                $region57: #{separable_conv1d.1} parent=50 // loop_footer_branch
                  %161 = sbr.rel target = $region53
                $region58: #{separable_conv1d.1} parent=50 // loop_exit
                  _
              $region51: #{separable_conv1d.1} parent=35 // pred_fallthru
                _
              // Predicated region
              $region59: #{separable_conv1d.1} parent=35 // pred_check
                _
              $region60: #{separable_conv1d.1} parent=35 // pred_check_branch
                %174 = sbr.rel target = $region62
              $region61: #{separable_conv1d.1} parent=35 // pred_region
                _
              $region62: #{separable_conv1d.1} parent=35 // pred_fallthru
                _
            $region36: #{separable_conv1d.1} parent=31 // pred_fallthru
              _
            // Predicated region
            $region37: #{separable_conv1d.1} parent=31 // pred_check
              _
            $region38: #{separable_conv1d.1} parent=31 // pred_check_branch
              %145 = sbr.rel target = $region40
            $region39: #{separable_conv1d.1} parent=31 // pred_region
              loop: start=0, step=1, limit=1
              $region41: #{separable_conv1d.1} parent=39 // loop_pre_header
                _
              $region42: #{separable_conv1d.1} parent=39 // loop_header
                %s148 = sphi 0, %s152
                %p149 = scmp.ge.s32.totalorder %s148, 1
                %s153 = sphi %s139, %s139
                %s154 = sphi %s137, %s137
              $region43: #{separable_conv1d.1} parent=39 // loop_header_branch
                %151 = sbr.rel (%p149) target = $region47
              $region44: #{separable_conv1d.1} parent=39 // loop_body
                %v155 = vld [vmem:[%s153] sm:$0xff]
                %156 = vst [vmem:[%s154] sm:$0xff] %v155
                %v157 = vld [vmem:[%s153 + $0x10] sm:$0xff]
                %158 = vst [vmem:[%s154 + $0x8] sm:$0xff] %v157
              $region45: #{separable_conv1d.1} parent=39 // loop_footer
                %s152 = sadd.s32 1, %s148
              $region46: #{separable_conv1d.1} parent=39 // loop_footer_branch
                %147 = sbr.rel target = $region42
              $region47: #{separable_conv1d.1} parent=39 // loop_exit
                _
            $region40: #{separable_conv1d.1} parent=31 // pred_fallthru
              _
          $region32: #{separable_conv1d.1} parent=27 // pred_fallthru
            _
          %175 = vnop
        $region28: #{separable_conv1d.1} parent=23 // pred_fallthru
          _
      $region24: #{separable_conv1d.1} parent=5 // pred_fallthru
        _
      %p176 = scmp.le.s32.totalorder 1, %s12
      %p177 = scmp.lt.s32.totalorder %s12, 3
      %p178 = pnand %p176, %p177
      %p179 = pneg %p178
      // Predicated region
      $region63: #{separable_conv1d.1} parent=5 // pred_check
        _
      $region64: #{separable_conv1d.1} parent=5 // pred_check_branch
        %181 = sbr.rel (%p178) target = $region66
      $region65: #{separable_conv1d.1} parent=5 // pred_region
        %s182 = ssub.s32 %s12, 1
        %s183 = sand.u32 %s25, 1
        %s184 = sand.u32 %s25, 1
        %s185 = smul.addr %s184, 16
        %s186 = scalar_lea.vmem [#allocation3], %s185
        // Predicated region
        $region67: #{separable_conv1d.1} parent=65 // pred_check
          %p187 = pneg %p38
        $region68: #{separable_conv1d.1} parent=65 // pred_check_branch
          %189 = sbr.rel (%p187) target = $region70
        $region69: #{separable_conv1d.1} parent=65 // pred_region
          _
        $region70: #{separable_conv1d.1} parent=65 // pred_fallthru
          _
        %s190 = sand.u32 %s25, 1
        %s191 = sand.u32 %s25, 1
        %s192 = smul.addr %s191, 16
        %s193 = scalar_lea.vmem [#allocation3], %s192
        %p194 = pneg %p38
        %p195 = pneg %p35
        %p196 = pneg %p59
        %p197 = pneg %p56
        %p198 = pneg %p80
        %p199 = pneg %p77
        %p200 = pneg %p106
        %p201 = pneg %p103
        %s202 = sand.u32 %s93, 1
        %s203 = scalar_lea.sflag [#allocation5], %s202
        %s204 = sand.u32 %s93, 1
        %s205 = smul.addr %s204, 8
        %s206 = scalar_lea.vmem [#allocation4], %s205
        %v207 = vld [vmem:[%s186] sm:$0xff]
        %vm208 = vcmask 130048
        %209 = vst.msk [vmem:[#allocation2] sm:$0xff] %vm208, %v207
        %s210 = scalar_lea.vmem %s186, 8 [#allocation3]
        %v211 = vld [vmem:[%s210] sm:$0xff]
        %212 = vst.msk [vmem:[#allocation2 + $0x8] sm:$0xff] %vm208, %v211
        %v213 = vld [vmem:[%s186] sm:$0xff]
        %215 = vrot.lane.b32.xlu0 %v213, 127
        %v216 = vpop.permute.xlu0 %215
        %218 = vst.msk [vmem:[#allocation2 + $0x10] sm:$0xff] %vm208, %v216
        %v219 = vld [vmem:[%s210] sm:$0xff]
        %221 = vrot.lane.b32.xlu0 %v219, 127
        %v222 = vpop.permute.xlu0 %221
        %224 = vst.msk [vmem:[#allocation2 + $0x18] sm:$0xff] %vm208, %v222
        %v225 = vld [vmem:[%s186] sm:$0xff]
        %227 = vrot.lane.b32.xlu0 %v225, 126
        %v228 = vpop.permute.xlu0 %227
        %230 = vst.msk [vmem:[#allocation2 + $0x20] sm:$0xff] %vm208, %v228
        %v231 = vld [vmem:[%s1] sm:$0xff]
        %v232 = vld [vmem:[#allocation2] sm:$0xff]
        %v233 = vld [vmem:[#allocation2 + $0x8] sm:$0xff]
        %v234 = vld [vmem:[#allocation2 + $0x10] sm:$0xff]
        %v235 = vld [vmem:[#allocation2 + $0x18] sm:$0xff]
        %v236 = vld [vmem:[#allocation2 + $0x20] sm:$0xff]
        %v237 = vld [vmem:[%s2] sm:$0xff]
        %239 = vset.pattern.permute.xlu0 0
        %240 = vperm.xlu0 %239, %v237
        %v241 = vpop.permute.xlu0 %240
        %vm243 = vcmask 326656
        %v245 = vsel %vm243, %v231, 0
        %247 = vmatprep.subr.mxu0 0.0
        %248 = vmatpush1.msra.mxu0 %v232
        %249 = vmatprep.subr.mxu0 0.0
        %250 = vmatpush1.msra.mxu0 %v233
        %251 = vmatprep.subr.mxu0 0.0
        %252 = vmatpush1.msra.mxu0 %v234
        %253 = vmatprep.subr.mxu0 0.0
        %254 = vmatpush1.msra.mxu0 %v235
        %255 = vmatprep.subr.mxu0 0.0
        %256 = vmatpush1.msra.mxu0 %v236
        %257 = vmatprep.subr.mxu0 0.0
        %258 = vmatpush1.msra.mxu0 0.0
        %259 = vmatprep.subr.mxu0 0.0
        %260 = vmatpush1.msra.mxu0 0.0
        %261 = vmatprep.subr.mxu0 0.0
        %262 = vmatpush1.msra.mxu0 0.0
        %263 = vmatprep.subr.mxu0 0.0
        %264 = vmatpush1.msra.mxu0 0.0
        %265 = vmatprep.subr.mxu0 0.0
        %266 = vmatpush1.msra.mxu0 0.0
        %267 = vmatprep.subr.mxu0 0.0
        %268 = vmatpush1.msra.mxu0 0.0
        %269 = vmatprep.subr.mxu0 0.0
        %270 = vmatpush1.msra.mxu0 0.0
        %271 = vmatprep.subr.mxu0 0.0
        %272 = vmatpush1.msra.mxu0 0.0
        %273 = vmatprep.subr.mxu0 0.0
        %274 = vmatpush1.msra.mxu0 0.0
        %275 = vmatprep.subr.mxu0 0.0
        %276 = vmatpush1.msra.mxu0 0.0
        %277 = vmatprep.subr.mxu0 0.0
        %278 = vmatpush1.msra.mxu0 0.0
        %279 = vmatprep.subr.mxu0 0.0
        %280 = vmatpush1.msra.mxu0 0.0
        %281 = vmatprep.subr.mxu0 0.0
        %282 = vmatpush1.msra.mxu0 0.0
        %283 = vmatprep.subr.mxu0 0.0
        %284 = vmatpush1.msra.mxu0 0.0
        %285 = vmatprep.subr.mxu0 0.0
        %286 = vmatpush1.msra.mxu0 0.0
        %287 = vmatprep.subr.mxu0 0.0
        %288 = vmatpush1.msra.mxu0 0.0
        %289 = vmatprep.subr.mxu0 0.0
        %290 = vmatpush1.msra.mxu0 0.0
        %291 = vmatprep.subr.mxu0 0.0
        %292 = vmatpush1.msra.mxu0 0.0
        %293 = vmatprep.subr.mxu0 0.0
        %294 = vmatpush1.msra.mxu0 0.0
        %295 = vmatprep.subr.mxu0 0.0
        %296 = vmatpush1.msra.mxu0 0.0
        %297 = vmatprep.subr.mxu0 0.0
        %298 = vmatpush1.msra.mxu0 0.0
        %299 = vmatprep.subr.mxu0 0.0
        %300 = vmatpush1.msra.mxu0 0.0
        %301 = vmatprep.subr.mxu0 0.0
        %302 = vmatpush1.msra.mxu0 0.0
        %303 = vmatprep.subr.mxu0 0.0
        %304 = vmatpush1.msra.mxu0 0.0
        %305 = vmatprep.subr.mxu0 0.0
        %306 = vmatpush1.msra.mxu0 0.0
        %307 = vmatprep.subr.mxu0 0.0
        %308 = vmatpush1.msra.mxu0 0.0
        %309 = vmatprep.subr.mxu0 0.0
        %310 = vmatpush1.msra.mxu0 0.0
        %311 = vmatprep.mubr.f32.mxu0 0.0
        %312 = vmatmul.mubr.f32.gmra.mrb[0].mxu0 %v245
        %v313 = vpop.f32.mrb[0].mxu0
        %v314 = vadd.f32 %v241, %v313
        %v315 = vpop.f32.mrb[0].mxu0
        %316 = vdwg.mxu0
        %317 = vst.msk [vmem:[%s206] sm:$0xff] %vm208, %v314
        %s318 = sand.u32 %s93, 1
        %s319 = scalar_lea.sflag [#allocation5], %s318
        %s320 = sand.u32 %s93, 1
        %s321 = smul.addr %s320, 8
        %s322 = scalar_lea.vmem [#allocation4], %s321
        // Predicated region
        $region71: #{separable_conv1d.1} parent=65 // pred_check
          %p323 = pneg %p103
        $region72: #{separable_conv1d.1} parent=65 // pred_check_branch
          %325 = sbr.rel (%p323) target = $region74
        $region73: #{separable_conv1d.1} parent=65 // pred_region
          %s327 = ssub.s32 128, 128
          %328 = vsyncadd %s319, %s327
          %s329 = smul.addr %s17, 128
          %s330 = scalar_lea.hbm %s3, %s329
          %s332 = sshll.u32 %s322, 4
          %s333 = int_to_ptr.vmem [resolvable:$true] %s332
          %335 = dma.vmem_to_hbm [thread:$0]  %s333, 128, %s330, %s319
        $region74: #{separable_conv1d.1} parent=65 // pred_fallthru
          _
      $region66: #{separable_conv1d.1} parent=5 // pred_fallthru
        _
      %p336 = scmp.le.s32.totalorder 2, %s12
      // Predicated region
      $region75: #{separable_conv1d.1} parent=5 // pred_check
        %p337 = pneg %p336
      $region76: #{separable_conv1d.1} parent=5 // pred_check_branch
        %339 = sbr.rel (%p337) target = $region78
      $region77: #{separable_conv1d.1} parent=5 // pred_region
        %s340 = ssub.s32 %s12, 2
        // Predicated region
        $region79: #{separable_conv1d.1} parent=77 // pred_check
          %p341 = pneg %p109
        $region80: #{separable_conv1d.1} parent=77 // pred_check_branch
          %343 = sbr.rel (%p341) target = $region82
        $region81: #{separable_conv1d.1} parent=77 // pred_region
          %s344 = sand.u32 %s94, 1
          %s345 = scalar_lea.sflag [#allocation5], %s344
          %s346 = sand.u32 %s94, 1
          %s347 = smul.addr %s346, 8
          %s348 = scalar_lea.vmem [#allocation4], %s347
          %349 = dma.done %s345, 128
        $region82: #{separable_conv1d.1} parent=77 // pred_fallthru
          _
      $region78: #{separable_conv1d.1} parent=5 // pred_fallthru
        _
    $region6: #{separable_conv1d.1} parent=1 // loop_footer
      %s16 = sadd.s32 1, %s12
    $region7: #{separable_conv1d.1} parent=1 // loop_footer_branch
      %11 = sbr.rel target = $region3
    $region8: #{separable_conv1d.1} parent=1 // loop_exit
      _
    %350 = vsyncpa [#allocation5], 1
    %s351 = scalar_lea.sflag [#allocation5], 1
    %352 = vsyncpa %s351, 1

</llo_original>
